<compile_context>
chip_gen: v6e
topology: v6e:2x2x1
jax: 0.10.0
libtpu: 0.0.40
codegen_flags: <defaults>
</compile_context>

<pallas_src>
import jax
import jax.numpy as jnp
from jax.experimental import pallas as pl
from jax.experimental.pallas import tpu as pltpu

NUM_CLASSES = 16
HIDDEN = 128          # lane-aligned embedding dim
DROPOUT_PROB = 0.1
BATCH = 8


def _round_up(x, m):
    return ((x + m - 1) // m) * m


# ------------------------- Pallas kernel -------------------------
def _label_embed_kernel(eff_ref, table_ref, out_ref):
    # eff_ref:   (B_pad, 1) int32 VMEM — effective label ids (drop already applied)
    # table_ref: (C_pad, H) f32   VMEM — embedding table, zero-padded rows
    # out_ref:   (B_pad, H) f32   VMEM
    eff = eff_ref[...]                                            # (B_pad, 1)
    b_pad = out_ref.shape[0]
    c_pad = table_ref.shape[0]

    # one-hot gather on the MXU: onehot is exact 0/1, HIGHEST precision keeps
    # the f32 table rows bit-exact through the matmul.
    class_ids = jax.lax.broadcasted_iota(jnp.int32, (b_pad, c_pad), 1)
    onehot = (class_ids == eff).astype(table_ref.dtype)           # (B_pad, C_pad)

    out_ref[...] = jnp.dot(
        onehot,
        table_ref[...],
        precision=jax.lax.Precision.HIGHEST,
        preferred_element_type=jnp.float32,
    ).astype(out_ref.dtype)


def embedding_lookup(eff_labels, table_padded):
    """out[b, :] = table_padded[eff_labels[b], :]  (out-of-range -> zeros)."""
    B = eff_labels.shape[0]
    C_pad, H = table_padded.shape
    B_pad = _round_up(max(B, 8), 8)

    eff2d = eff_labels.astype(jnp.int32).reshape(B, 1)
    if B_pad != B:
        eff2d = jnp.pad(eff2d, ((0, B_pad - B), (0, 0)))          # padded rows -> class 0

    out = pl.pallas_call(
        _label_embed_kernel,
        out_shape=jax.ShapeDtypeStruct((B_pad, H), table_padded.dtype),
        # No grid: single invocation, whole (tiny) operands resident in VMEM,
        # no double buffering.
        in_specs=[
            pl.BlockSpec(memory_space=pltpu.MemorySpace.VMEM),    # eff labels
            pl.BlockSpec(memory_space=pltpu.MemorySpace.VMEM),    # full table
        ],
        out_specs=pl.BlockSpec(memory_space=pltpu.MemorySpace.VMEM),
    )(eff2d, table_padded)

    return out[:B] if B_pad != B else out


# ------------------------- module-equivalent glue -------------------------
def init_label_embedder(key, num_classes, hidden_size, dropout_prob):
    use_cfg_embedding = int(dropout_prob > 0)
    rows = num_classes + use_cfg_embedding
    # nn.Embedding default init: N(0, 1)
    table = jax.random.normal(key, (rows, hidden_size), dtype=jnp.float32)

    # Pad ONCE at init: class dim to a multiple of 128 (lane-dense one-hot LHS),
    # padded rows stay zero so out-of-range ids produce zero rows (never read).
    c_pad = _round_up(max(rows, 8), 128)
    table_padded = jnp.pad(table, ((0, c_pad - rows), (0, 0)))

    return {
        "table": table,                 # unpadded view (reference / export)
        "table_padded": table_padded,   # what the kernel consumes
        "num_classes": num_classes,
        "dropout_prob": dropout_prob,
        "has_cfg_row": bool(use_cfg_embedding),
    }


def label_embedder_forward(params, labels, train, drop_key=None,
                           force_drop_ids=None):
    use_dropout = params["dropout_prob"] > 0
    B = labels.shape[0]
    eff = labels.astype(jnp.int32)

    if (train and use_dropout) or (force_drop_ids is not None):
        if not params["has_cfg_row"]:
            # No CFG null row allocated (dropout_prob == 0) -> dropping would be OOB.
            raise ValueError(
                "token_drop requires a CFG null-class row (dropout_prob > 0).")
        if force_drop_ids is None:
            drop_ids = jax.random.uniform(drop_key, (B,)) < params["dropout_prob"]
        else:
            drop_ids = force_drop_ids == 1
        # token_drop fused here; this `where` fuses with the reshape/pad in XLA.
        eff = jnp.where(drop_ids, jnp.int32(params["num_classes"]), eff)

    emb = embedding_lookup(eff, params["table_padded"])    # [B, H]
    return emb[:, None, :]                                 # unsqueeze(1) -> [B, 1, H]


# ------------------------- demo / smoke test -------------------------
if __name__ == "__main__":
    root = jax.random.PRNGKey(0)
    k_tab, k_lbl, k_drop = jax.random.split(root, 3)

    params = init_label_embedder(k_tab, NUM_CLASSES, HIDDEN, DROPOUT_PROB)
    labels = jax.random.randint(k_lbl, (BATCH,), 0, NUM_CLASSES, dtype=jnp.int32)

    # eval path (no dropout)
    emb_eval = label_embedder_forward(params, labels, train=False)
    emb_eval = jax.block_until_ready(emb_eval)

    # train path with deterministic forced drops (classifier-free guidance nulls)
    force_drop = (jnp.arange(BATCH) % 2).astype(jnp.int32)  # drop every other label
    emb_train = label_embedder_forward(params, labels, train=True,
                                       drop_key=k_drop,
                                       force_drop_ids=force_drop)
    emb_train = jax.block_until_ready(emb_train)

    # correctness check vs plain-JAX reference
    ref_eval = params["table"][labels][:, None, :]
    dropped = jnp.where(force_drop == 1, NUM_CLASSES, labels)
    ref_train = params["table"][dropped][:, None, :]

    assert emb_eval.shape == (BATCH, 1, HIDDEN)
    assert emb_train.shape == (BATCH, 1, HIDDEN)
    assert jnp.allclose(emb_eval, ref_eval)
    assert jnp.allclose(emb_train, ref_train)

    print("KERNEL_OK")
</pallas_src>

<mosaic_0001>
module attributes {stable_mosaic.version = 11 : i64} {
  func.func @_label_embed_kernel(%arg0: memref<8x1xi32, #tpu.memory_space<vmem>>, %arg1: memref<128x128xf32, #tpu.memory_space<vmem>>, %arg2: memref<8x128xf32, #tpu.memory_space<vmem>>) attributes {dimension_semantics = [], scalar_prefetch = 0 : i64, scratch_operands = 0 : i64, tpu.core_type = #tpu.core_type<tc>} {
    %c0 = arith.constant 0 : index
    %c0_0 = arith.constant 0 : index
    %0 = vector.load %arg0[%c0, %c0_0] : memref<8x1xi32, #tpu.memory_space<vmem>>, vector<8x1xi32>
    %1 = tpu.iota {dimensions = array<i32: 1>} : vector<8x128xi32>
    %2 = vector.broadcast %0 : vector<8x1xi32> to vector<8x128xi32>
    %3 = arith.cmpi eq, %1, %2 : vector<8x128xi32>
    %4 = arith.extui %3 : vector<8x128xi1> to vector<8x128xi32>
    %5 = arith.sitofp %4 : vector<8x128xi32> to vector<8x128xf32>
    %c0_1 = arith.constant 0 : index
    %c0_2 = arith.constant 0 : index
    %6 = vector.load %arg1[%c0_1, %c0_2] : memref<128x128xf32, #tpu.memory_space<vmem>>, vector<128x128xf32>
    %cst = arith.constant dense<0.000000e+00> : vector<8x128xf32>
    %7 = tpu.matmul %5, %6, %cst {dimension_numbers = #tpu.dot_dimension_numbers<[1], [0], [0], [1], [0, 0, 1, 1], [], []>, precision = #tpu.contract_precision<fp32>} : vector<8x128xf32>, vector<128x128xf32>, vector<8x128xf32> -> vector<8x128xf32>
    %c0_3 = arith.constant 0 : index
    %c0_4 = arith.constant 0 : index
    %8 = vector.load %arg2[%c0_3, %c0_4] : memref<8x128xf32, #tpu.memory_space<vmem>>, vector<8x128xf32>
    tpu.vector_store %arg2[%c0_3, %c0_4], %7 {strides = array<i32>} : memref<8x128xf32, #tpu.memory_space<vmem>>, vector<8x128xf32>,
    return
  }
}

</mosaic_0001>

<llo_original>
// kernel: tpu_custom_call.1
$region0: #{tpu_custom_call.1}
  #allocation0 [shape = 'u32[]', space=smem, size = 0x4, offset = 0x4, fixed_abs, tag = 'smem constant byte address 0x4 - core index']
  #allocation1 [shape = 'u32[144,128]{1,0:T(1,128)}', space=vmem, size = 0x12000, scoped, tag = 'internal scratch']
  %s0 = inlined_call_operand.vmem [shape: s32[8,1], index: 0, kind: input, shape index: {}]
  %s1 = inlined_call_operand.hbm [shape: f32[128,128], index: 1, kind: input, shape index: {}]
  %s2 = inlined_call_operand.hbm [shape: f32[8,128], index: 2, kind: output, shape index: {}]
  %s3 = sld [smem:[#allocation0]]
  $region22: #{tpu_custom_call.1} parent=0
    _
  %s5 = ssub.s32 1, %s3
  %s6 = scalar_select 0, %s5, %s3
  $region1: #{tpu_custom_call.1} parent=0
    #allocation2 [shape = 'u8[65536]{0}', space=vmem, size = 0x10000, scoped, tag = 'input window, operand 1, single buffered']
    #allocation3 [shape = 's32[1]{0}', space=sflag, size = 0x4, scoped, tag = 'scoped memory for tpu_custom_call.1']
    #allocation4 [shape = 's32[1]{0}', space=sflag, size = 0x4, scoped, tag = 'scoped memory for tpu_custom_call.1']
    #allocation5 [shape = 'u8[4096]{0}', space=vmem, size = 0x1000, scoped, tag = 'output window, operand 0, single buffered']
    %7 = vsyncpa [#allocation3], 0
    %8 = vsyncpa [#allocation4], 0
    // Predicated region
    $region2: #{tpu_custom_call.1} parent=1 // pred_check
      _
    $region3: #{tpu_custom_call.1} parent=1 // pred_check_branch
      %10 = sbr.rel (0) target = $region5
    $region4: #{tpu_custom_call.1} parent=1 // pred_region
      _
    $region5: #{tpu_custom_call.1} parent=1 // pred_fallthru
      _
    // Predicated region
    $region6: #{tpu_custom_call.1} parent=1 // pred_check
      _
    $region7: #{tpu_custom_call.1} parent=1 // pred_check_branch
      %12 = sbr.rel (0) target = $region9
    $region8: #{tpu_custom_call.1} parent=1 // pred_region
      %s14 = ssub.s32 2048, 2048
      %15 = vsyncadd [#allocation3], %s14
      %s16 = sshll.u32 [#allocation2], 4
      %s17 = int_to_ptr.vmem [resolvable:$true] %s16
      %22 = dma.hbm_to_vmem [thread:$0]  %s1, 2048, %s17, [#allocation3], 128, 128, 8
    $region9: #{tpu_custom_call.1} parent=1 // pred_fallthru
      _
    // Predicated region
    $region10: #{tpu_custom_call.1} parent=1 // pred_check
      _
    $region11: #{tpu_custom_call.1} parent=1 // pred_check_branch
      %24 = sbr.rel (0) target = $region13
    $region12: #{tpu_custom_call.1} parent=1 // pred_region
      %25 = dma.done [#allocation3], 2048
    $region13: #{tpu_custom_call.1} parent=1 // pred_fallthru
      _
    %v26 = vld [vmem:[%s0] sm:$0xff]
    %v27 = vlaneseq
    %v28 = vand.u32 %v27, 127
    %29 = vset.pattern.permute.xlu0 0
    %30 = vperm.xlu0 %29, %v26
    %v31 = vpop.permute.xlu0 %30
    %vm32 = vcmp.eq.s32.totalorder %v28, %v31
    %v33 = vsel %vm32, 1, 0
    %v34 = vcvt.s32.f32 %v33
    %v35 = vld [vmem:[#allocation2] sm:$0xff]
    %v36 = vld [vmem:[#allocation2 + $0x8] sm:$0xff]
    %v37 = vld [vmem:[#allocation2 + $0x10] sm:$0xff]
    %v38 = vld [vmem:[#allocation2 + $0x18] sm:$0xff]
    %v39 = vld [vmem:[#allocation2 + $0x20] sm:$0xff]
    %v40 = vld [vmem:[#allocation2 + $0x28] sm:$0xff]
    %v41 = vld [vmem:[#allocation2 + $0x30] sm:$0xff]
    %v42 = vld [vmem:[#allocation2 + $0x38] sm:$0xff]
    %v43 = vld [vmem:[#allocation2 + $0x40] sm:$0xff]
    %v44 = vld [vmem:[#allocation2 + $0x48] sm:$0xff]
    %v45 = vld [vmem:[#allocation2 + $0x50] sm:$0xff]
    %v46 = vld [vmem:[#allocation2 + $0x58] sm:$0xff]
    %v47 = vld [vmem:[#allocation2 + $0x60] sm:$0xff]
    %v48 = vld [vmem:[#allocation2 + $0x68] sm:$0xff]
    %v49 = vld [vmem:[#allocation2 + $0x70] sm:$0xff]
    %v50 = vld [vmem:[#allocation2 + $0x78] sm:$0xff]
    %51 = vmatprep.subr.mxu0 0.0
    %v52 = vand.u32 %v50, 4294901760
    %53 = vmatpush1.msra.mxu0 %v52
    %54 = vmatprep.subr.mxu0 0.0
    %v55 = vand.u32 %v49, 4294901760
    %56 = vmatpush1.msra.mxu0 %v55
    %57 = vmatprep.subr.mxu0 0.0
    %v58 = vand.u32 %v48, 4294901760
    %59 = vmatpush1.msra.mxu0 %v58
    %60 = vmatprep.subr.mxu0 0.0
    %v61 = vand.u32 %v47, 4294901760
    %62 = vmatpush1.msra.mxu0 %v61
    %63 = vmatprep.subr.mxu0 0.0
    %v64 = vand.u32 %v46, 4294901760
    %65 = vmatpush1.msra.mxu0 %v64
    %66 = vmatprep.subr.mxu0 0.0
    %v67 = vand.u32 %v45, 4294901760
    %68 = vmatpush1.msra.mxu0 %v67
    %69 = vmatprep.subr.mxu0 0.0
    %v70 = vand.u32 %v44, 4294901760
    %71 = vmatpush1.msra.mxu0 %v70
    %72 = vmatprep.subr.mxu0 0.0
    %v73 = vand.u32 %v43, 4294901760
    %74 = vmatpush1.msra.mxu0 %v73
    %75 = vmatprep.subr.mxu0 0.0
    %v76 = vand.u32 %v42, 4294901760
    %77 = vmatpush1.msra.mxu0 %v76
    %78 = vmatprep.subr.mxu0 0.0
    %v79 = vand.u32 %v41, 4294901760
    %80 = vmatpush1.msra.mxu0 %v79
    %81 = vmatprep.subr.mxu0 0.0
    %v82 = vand.u32 %v40, 4294901760
    %83 = vmatpush1.msra.mxu0 %v82
    %84 = vmatprep.subr.mxu0 0.0
    %v85 = vand.u32 %v39, 4294901760
    %86 = vmatpush1.msra.mxu0 %v85
    %87 = vmatprep.subr.mxu0 0.0
    %v88 = vand.u32 %v38, 4294901760
    %89 = vmatpush1.msra.mxu0 %v88
    %90 = vmatprep.subr.mxu0 0.0
    %v91 = vand.u32 %v37, 4294901760
    %92 = vmatpush1.msra.mxu0 %v91
    %93 = vmatprep.subr.mxu0 0.0
    %v94 = vand.u32 %v36, 4294901760
    %95 = vmatpush1.msra.mxu0 %v94
    %96 = vmatprep.subr.mxu0 0.0
    %v97 = vand.u32 %v35, 4294901760
    %98 = vmatpush1.msra.mxu0 %v97
    %99 = vmatprep.subr.mxu0 0.0
    %100 = vmatpush2.msra.mxu0 0.0
    %101 = vmatprep.subr.mxu0 0.0
    %102 = vmatpush2.msra.mxu0 0.0
    %103 = vmatprep.subr.mxu0 0.0
    %104 = vmatpush2.msra.mxu0 0.0
    %105 = vmatprep.subr.mxu0 0.0
    %106 = vmatpush2.msra.mxu0 0.0
    %107 = vmatprep.subr.mxu0 0.0
    %108 = vmatpush2.msra.mxu0 0.0
    %109 = vmatprep.subr.mxu0 0.0
    %110 = vmatpush2.msra.mxu0 0.0
    %111 = vmatprep.subr.mxu0 0.0
    %112 = vmatpush2.msra.mxu0 0.0
    %113 = vmatprep.subr.mxu0 0.0
    %114 = vmatpush2.msra.mxu0 0.0
    %115 = vmatprep.subr.mxu0 0.0
    %116 = vmatpush2.msra.mxu0 0.0
    %117 = vmatprep.subr.mxu0 0.0
    %118 = vmatpush2.msra.mxu0 0.0
    %119 = vmatprep.subr.mxu0 0.0
    %120 = vmatpush2.msra.mxu0 0.0
    %121 = vmatprep.subr.mxu0 0.0
    %122 = vmatpush2.msra.mxu0 0.0
    %123 = vmatprep.subr.mxu0 0.0
    %124 = vmatpush2.msra.mxu0 0.0
    %125 = vmatprep.subr.mxu0 0.0
    %126 = vmatpush2.msra.mxu0 0.0
    %127 = vmatprep.subr.mxu0 0.0
    %128 = vmatpush2.msra.mxu0 0.0
    %129 = vmatprep.subr.mxu0 0.0
    %130 = vmatpush2.msra.mxu0 0.0
    %131 = vmatprep.mubr.f32.mxu0 0.0
    %v132 = vand.u32 %v34, 4294901760
    %v133 = vsub.f32 %v34, %v132
    %v134 = vand.u32 %v133, 4294901760
    %v135 = vsub.f32 %v133, %v134
    %v136 = vand.u32 %v135, 4294901760
    %137 = vmatmul.mubr.f32.gmra.mxu0 %v136
    %v138 = vpop.f32.mrf.mxu0
    %v139 = vadd.f32 0.0, %v138
    %v140 = vpop.f32.mrf.mxu0
    %141 = vdwg.mxu0
    %142 = vmatprep.subr.mxu0 0.0
    %v143 = vand.u32 %v50, 4294901760
    %v144 = vsub.f32 %v50, %v143
    %v145 = vand.u32 %v144, 4294901760
    %v146 = vsub.f32 %v144, %v145
    %v147 = vand.u32 %v146, 4294901760
    %148 = vmatpush1.msra.mxu0 %v147
    %149 = vmatprep.subr.mxu0 0.0
    %v150 = vand.u32 %v49, 4294901760
    %v151 = vsub.f32 %v49, %v150
    %v152 = vand.u32 %v151, 4294901760
    %v153 = vsub.f32 %v151, %v152
    %v154 = vand.u32 %v153, 4294901760
    %155 = vmatpush1.msra.mxu0 %v154
    %156 = vmatprep.subr.mxu0 0.0
    %v157 = vand.u32 %v48, 4294901760
    %v158 = vsub.f32 %v48, %v157
    %v159 = vand.u32 %v158, 4294901760
    %v160 = vsub.f32 %v158, %v159
    %v161 = vand.u32 %v160, 4294901760
    %162 = vmatpush1.msra.mxu0 %v161
    %163 = vmatprep.subr.mxu0 0.0
    %v164 = vand.u32 %v47, 4294901760
    %v165 = vsub.f32 %v47, %v164
    %v166 = vand.u32 %v165, 4294901760
    %v167 = vsub.f32 %v165, %v166
    %v168 = vand.u32 %v167, 4294901760
    %169 = vmatpush1.msra.mxu0 %v168
    %170 = vmatprep.subr.mxu0 0.0
    %v171 = vand.u32 %v46, 4294901760
    %v172 = vsub.f32 %v46, %v171
    %v173 = vand.u32 %v172, 4294901760
    %v174 = vsub.f32 %v172, %v173
    %v175 = vand.u32 %v174, 4294901760
    %176 = vmatpush1.msra.mxu0 %v175
    %177 = vmatprep.subr.mxu0 0.0
    %v178 = vand.u32 %v45, 4294901760
    %v179 = vsub.f32 %v45, %v178
    %v180 = vand.u32 %v179, 4294901760
    %v181 = vsub.f32 %v179, %v180
    %v182 = vand.u32 %v181, 4294901760
    %183 = vmatpush1.msra.mxu0 %v182
    %184 = vmatprep.subr.mxu0 0.0
    %v185 = vand.u32 %v44, 4294901760
    %v186 = vsub.f32 %v44, %v185
    %v187 = vand.u32 %v186, 4294901760
    %v188 = vsub.f32 %v186, %v187
    %v189 = vand.u32 %v188, 4294901760
    %190 = vmatpush1.msra.mxu0 %v189
    %191 = vmatprep.subr.mxu0 0.0
    %v192 = vand.u32 %v43, 4294901760
    %v193 = vsub.f32 %v43, %v192
    %v194 = vand.u32 %v193, 4294901760
    %v195 = vsub.f32 %v193, %v194
    %v196 = vand.u32 %v195, 4294901760
    %197 = vmatpush1.msra.mxu0 %v196
    %198 = vmatprep.subr.mxu0 0.0
    %v199 = vand.u32 %v42, 4294901760
    %v200 = vsub.f32 %v42, %v199
    %v201 = vand.u32 %v200, 4294901760
    %v202 = vsub.f32 %v200, %v201
    %v203 = vand.u32 %v202, 4294901760
    %204 = vmatpush1.msra.mxu0 %v203
    %205 = vmatprep.subr.mxu0 0.0
    %v206 = vand.u32 %v41, 4294901760
    %v207 = vsub.f32 %v41, %v206
    %v208 = vand.u32 %v207, 4294901760
    %v209 = vsub.f32 %v207, %v208
    %v210 = vand.u32 %v209, 4294901760
    %211 = vmatpush1.msra.mxu0 %v210
    %212 = vmatprep.subr.mxu0 0.0
    %v213 = vand.u32 %v40, 4294901760
    %v214 = vsub.f32 %v40, %v213
    %v215 = vand.u32 %v214, 4294901760
    %v216 = vsub.f32 %v214, %v215
    %v217 = vand.u32 %v216, 4294901760
    %218 = vmatpush1.msra.mxu0 %v217
    %219 = vmatprep.subr.mxu0 0.0
    %v220 = vand.u32 %v39, 4294901760
    %v221 = vsub.f32 %v39, %v220
    %v222 = vand.u32 %v221, 4294901760
    %v223 = vsub.f32 %v221, %v222
    %v224 = vand.u32 %v223, 4294901760
    %225 = vmatpush1.msra.mxu0 %v224
    %226 = vmatprep.subr.mxu0 0.0
    %v227 = vand.u32 %v38, 4294901760
    %v228 = vsub.f32 %v38, %v227
    %v229 = vand.u32 %v228, 4294901760
    %v230 = vsub.f32 %v228, %v229
    %v231 = vand.u32 %v230, 4294901760
    %232 = vmatpush1.msra.mxu0 %v231
    %233 = vmatprep.subr.mxu0 0.0
    %v234 = vand.u32 %v37, 4294901760
    %v235 = vsub.f32 %v37, %v234
    %v236 = vand.u32 %v235, 4294901760
    %v237 = vsub.f32 %v235, %v236
    %v238 = vand.u32 %v237, 4294901760
    %239 = vmatpush1.msra.mxu0 %v238
    %240 = vmatprep.subr.mxu0 0.0
    %v241 = vand.u32 %v36, 4294901760
    %v242 = vsub.f32 %v36, %v241
    %v243 = vand.u32 %v242, 4294901760
    %v244 = vsub.f32 %v242, %v243
    %v245 = vand.u32 %v244, 4294901760
    %246 = vmatpush1.msra.mxu0 %v245
    %247 = vmatprep.subr.mxu0 0.0
    %v248 = vand.u32 %v35, 4294901760
    %v249 = vsub.f32 %v35, %v248
    %v250 = vand.u32 %v249, 4294901760
    %v251 = vsub.f32 %v249, %v250
    %v252 = vand.u32 %v251, 4294901760
    %253 = vmatpush1.msra.mxu0 %v252
    %254 = vmatprep.subr.mxu0 0.0
    %255 = vmatpush2.msra.mxu0 0.0
    %256 = vmatprep.subr.mxu0 0.0
    %257 = vmatpush2.msra.mxu0 0.0
    %258 = vmatprep.subr.mxu0 0.0
    %259 = vmatpush2.msra.mxu0 0.0
    %260 = vmatprep.subr.mxu0 0.0
    %261 = vmatpush2.msra.mxu0 0.0
    %262 = vmatprep.subr.mxu0 0.0
    %263 = vmatpush2.msra.mxu0 0.0
    %264 = vmatprep.subr.mxu0 0.0
    %265 = vmatpush2.msra.mxu0 0.0
    %266 = vmatprep.subr.mxu0 0.0
    %267 = vmatpush2.msra.mxu0 0.0
    %268 = vmatprep.subr.mxu0 0.0
    %269 = vmatpush2.msra.mxu0 0.0
    %270 = vmatprep.subr.mxu0 0.0
    %271 = vmatpush2.msra.mxu0 0.0
    %272 = vmatprep.subr.mxu0 0.0
    %273 = vmatpush2.msra.mxu0 0.0
    %274 = vmatprep.subr.mxu0 0.0
    %275 = vmatpush2.msra.mxu0 0.0
    %276 = vmatprep.subr.mxu0 0.0
    %277 = vmatpush2.msra.mxu0 0.0
    %278 = vmatprep.subr.mxu0 0.0
    %279 = vmatpush2.msra.mxu0 0.0
    %280 = vmatprep.subr.mxu0 0.0
    %281 = vmatpush2.msra.mxu0 0.0
    %282 = vmatprep.subr.mxu0 0.0
    %283 = vmatpush2.msra.mxu0 0.0
    %284 = vmatprep.subr.mxu0 0.0
    %285 = vmatpush2.msra.mxu0 0.0
    %286 = vmatprep.mubr.f32.mxu0 0.0
    %v287 = vand.u32 %v34, 4294901760
    %288 = vmatmul.mubr.f32.gmra.mxu0 %v287
    %v289 = vpop.f32.mrf.mxu0
    %v290 = vadd.f32 %v139, %v289
    %v291 = vpop.f32.mrf.mxu0
    %292 = vdwg.mxu0
    %293 = vmatprep.subr.mxu0 0.0
    %v294 = vand.u32 %v50, 4294901760
    %v295 = vsub.f32 %v50, %v294
    %296 = vmatpush1.msra.mxu0 %v295
    %297 = vmatprep.subr.mxu0 0.0
    %v298 = vand.u32 %v49, 4294901760
    %v299 = vsub.f32 %v49, %v298
    %300 = vmatpush1.msra.mxu0 %v299
    %301 = vmatprep.subr.mxu0 0.0
    %v302 = vand.u32 %v48, 4294901760
    %v303 = vsub.f32 %v48, %v302
    %304 = vmatpush1.msra.mxu0 %v303
    %305 = vmatprep.subr.mxu0 0.0
    %v306 = vand.u32 %v47, 4294901760
    %v307 = vsub.f32 %v47, %v306
    %308 = vmatpush1.msra.mxu0 %v307
    %309 = vmatprep.subr.mxu0 0.0
    %v310 = vand.u32 %v46, 4294901760
    %v311 = vsub.f32 %v46, %v310
    %312 = vmatpush1.msra.mxu0 %v311
    %313 = vmatprep.subr.mxu0 0.0
    %v314 = vand.u32 %v45, 4294901760
    %v315 = vsub.f32 %v45, %v314
    %316 = vmatpush1.msra.mxu0 %v315
    %317 = vmatprep.subr.mxu0 0.0
    %v318 = vand.u32 %v44, 4294901760
    %v319 = vsub.f32 %v44, %v318
    %320 = vmatpush1.msra.mxu0 %v319
    %321 = vmatprep.subr.mxu0 0.0
    %v322 = vand.u32 %v43, 4294901760
    %v323 = vsub.f32 %v43, %v322
    %324 = vmatpush1.msra.mxu0 %v323
    %325 = vmatprep.subr.mxu0 0.0
    %v326 = vand.u32 %v42, 4294901760
    %v327 = vsub.f32 %v42, %v326
    %328 = vmatpush1.msra.mxu0 %v327
    %329 = vmatprep.subr.mxu0 0.0
    %v330 = vand.u32 %v41, 4294901760
    %v331 = vsub.f32 %v41, %v330
    %332 = vmatpush1.msra.mxu0 %v331
    %333 = vmatprep.subr.mxu0 0.0
    %v334 = vand.u32 %v40, 4294901760
    %v335 = vsub.f32 %v40, %v334
    %336 = vmatpush1.msra.mxu0 %v335
    %337 = vmatprep.subr.mxu0 0.0
    %v338 = vand.u32 %v39, 4294901760
    %v339 = vsub.f32 %v39, %v338
    %340 = vmatpush1.msra.mxu0 %v339
    %341 = vmatprep.subr.mxu0 0.0
    %v342 = vand.u32 %v38, 4294901760
    %v343 = vsub.f32 %v38, %v342
    %344 = vmatpush1.msra.mxu0 %v343
    %345 = vmatprep.subr.mxu0 0.0
    %v346 = vand.u32 %v37, 4294901760
    %v347 = vsub.f32 %v37, %v346
    %348 = vmatpush1.msra.mxu0 %v347
    %349 = vmatprep.subr.mxu0 0.0
    %v350 = vand.u32 %v36, 4294901760
    %v351 = vsub.f32 %v36, %v350
    %352 = vmatpush1.msra.mxu0 %v351
    %353 = vmatprep.subr.mxu0 0.0
    %v354 = vand.u32 %v35, 4294901760
    %v355 = vsub.f32 %v35, %v354
    %356 = vmatpush1.msra.mxu0 %v355
    %357 = vmatprep.subr.mxu0 0.0
    %358 = vmatpush2.msra.mxu0 0.0
    %359 = vmatprep.subr.mxu0 0.0
    %360 = vmatpush2.msra.mxu0 0.0
    %361 = vmatprep.subr.mxu0 0.0
    %362 = vmatpush2.msra.mxu0 0.0
    %363 = vmatprep.subr.mxu0 0.0
    %364 = vmatpush2.msra.mxu0 0.0
    %365 = vmatprep.subr.mxu0 0.0
    %366 = vmatpush2.msra.mxu0 0.0
    %367 = vmatprep.subr.mxu0 0.0
    %368 = vmatpush2.msra.mxu0 0.0
    %369 = vmatprep.subr.mxu0 0.0
    %370 = vmatpush2.msra.mxu0 0.0
    %371 = vmatprep.subr.mxu0 0.0
    %372 = vmatpush2.msra.mxu0 0.0
    %373 = vmatprep.subr.mxu0 0.0
    %374 = vmatpush2.msra.mxu0 0.0
    %375 = vmatprep.subr.mxu0 0.0
    %376 = vmatpush2.msra.mxu0 0.0
    %377 = vmatprep.subr.mxu0 0.0
    %378 = vmatpush2.msra.mxu0 0.0
    %379 = vmatprep.subr.mxu0 0.0
    %380 = vmatpush2.msra.mxu0 0.0
    %381 = vmatprep.subr.mxu0 0.0
    %382 = vmatpush2.msra.mxu0 0.0
    %383 = vmatprep.subr.mxu0 0.0
    %384 = vmatpush2.msra.mxu0 0.0
    %385 = vmatprep.subr.mxu0 0.0
    %386 = vmatpush2.msra.mxu0 0.0
    %387 = vmatprep.subr.mxu0 0.0
    %388 = vmatpush2.msra.mxu0 0.0
    %389 = vmatprep.mubr.f32.mxu0 0.0
    %v390 = vand.u32 %v34, 4294901760
    %v391 = vsub.f32 %v34, %v390
    %392 = vmatmul.mubr.f32.gmra.mxu0 %v391
    %v393 = vpop.f32.mrf.mxu0
    %v394 = vadd.f32 %v290, %v393
    %v395 = vpop.f32.mrf.mxu0
    %396 = vdwg.mxu0
    %397 = vmatprep.subr.mxu0 0.0
    %v398 = vand.u32 %v50, 4294901760
    %399 = vmatpush1.msra.mxu0 %v398
    %400 = vmatprep.subr.mxu0 0.0
    %v401 = vand.u32 %v49, 4294901760
    %402 = vmatpush1.msra.mxu0 %v401
    %403 = vmatprep.subr.mxu0 0.0
    %v404 = vand.u32 %v48, 4294901760
    %405 = vmatpush1.msra.mxu0 %v404
    %406 = vmatprep.subr.mxu0 0.0
    %v407 = vand.u32 %v47, 4294901760
    %408 = vmatpush1.msra.mxu0 %v407
    %409 = vmatprep.subr.mxu0 0.0
    %v410 = vand.u32 %v46, 4294901760
    %411 = vmatpush1.msra.mxu0 %v410
    %412 = vmatprep.subr.mxu0 0.0
    %v413 = vand.u32 %v45, 4294901760
    %414 = vmatpush1.msra.mxu0 %v413
    %415 = vmatprep.subr.mxu0 0.0
    %v416 = vand.u32 %v44, 4294901760
    %417 = vmatpush1.msra.mxu0 %v416
    %418 = vmatprep.subr.mxu0 0.0
    %v419 = vand.u32 %v43, 4294901760
    %420 = vmatpush1.msra.mxu0 %v419
    %421 = vmatprep.subr.mxu0 0.0
    %v422 = vand.u32 %v42, 4294901760
    %423 = vmatpush1.msra.mxu0 %v422
    %424 = vmatprep.subr.mxu0 0.0
    %v425 = vand.u32 %v41, 4294901760
    %426 = vmatpush1.msra.mxu0 %v425
    %427 = vmatprep.subr.mxu0 0.0
    %v428 = vand.u32 %v40, 4294901760
    %429 = vmatpush1.msra.mxu0 %v428
    %430 = vmatprep.subr.mxu0 0.0
    %v431 = vand.u32 %v39, 4294901760
    %432 = vmatpush1.msra.mxu0 %v431
    %433 = vmatprep.subr.mxu0 0.0
    %v434 = vand.u32 %v38, 4294901760
    %435 = vmatpush1.msra.mxu0 %v434
    %436 = vmatprep.subr.mxu0 0.0
    %v437 = vand.u32 %v37, 4294901760
    %438 = vmatpush1.msra.mxu0 %v437
    %439 = vmatprep.subr.mxu0 0.0
    %v440 = vand.u32 %v36, 4294901760
    %441 = vmatpush1.msra.mxu0 %v440
    %442 = vmatprep.subr.mxu0 0.0
    %v443 = vand.u32 %v35, 4294901760
    %444 = vmatpush1.msra.mxu0 %v443
    %445 = vmatprep.subr.mxu0 0.0
    %446 = vmatpush2.msra.mxu0 0.0
    %447 = vmatprep.subr.mxu0 0.0
    %448 = vmatpush2.msra.mxu0 0.0
    %449 = vmatprep.subr.mxu0 0.0
    %450 = vmatpush2.msra.mxu0 0.0
    %451 = vmatprep.subr.mxu0 0.0
    %452 = vmatpush2.msra.mxu0 0.0
    %453 = vmatprep.subr.mxu0 0.0
    %454 = vmatpush2.msra.mxu0 0.0
    %455 = vmatprep.subr.mxu0 0.0
    %456 = vmatpush2.msra.mxu0 0.0
    %457 = vmatprep.subr.mxu0 0.0
    %458 = vmatpush2.msra.mxu0 0.0
    %459 = vmatprep.subr.mxu0 0.0
    %460 = vmatpush2.msra.mxu0 0.0
    %461 = vmatprep.subr.mxu0 0.0
    %462 = vmatpush2.msra.mxu0 0.0
    %463 = vmatprep.subr.mxu0 0.0
    %464 = vmatpush2.msra.mxu0 0.0
    %465 = vmatprep.subr.mxu0 0.0
    %466 = vmatpush2.msra.mxu0 0.0
    %467 = vmatprep.subr.mxu0 0.0
    %468 = vmatpush2.msra.mxu0 0.0
    %469 = vmatprep.subr.mxu0 0.0
    %470 = vmatpush2.msra.mxu0 0.0
    %471 = vmatprep.subr.mxu0 0.0
    %472 = vmatpush2.msra.mxu0 0.0
    %473 = vmatprep.subr.mxu0 0.0
    %474 = vmatpush2.msra.mxu0 0.0
    %475 = vmatprep.subr.mxu0 0.0
    %476 = vmatpush2.msra.mxu0 0.0
    %477 = vmatprep.mubr.f32.mxu0 0.0
    %v478 = vand.u32 %v34, 4294901760
    %v479 = vsub.f32 %v34, %v478
    %v480 = vand.u32 %v479, 4294901760
    %481 = vmatmul.mubr.f32.gmra.mxu0 %v480
    %v482 = vpop.f32.mrf.mxu0
    %v483 = vadd.f32 %v394, %v482
    %v484 = vpop.f32.mrf.mxu0
    %485 = vdwg.mxu0
    %486 = vmatprep.subr.mxu0 0.0
    %v487 = vand.u32 %v50, 4294901760
    %v488 = vsub.f32 %v50, %v487
    %v489 = vand.u32 %v488, 4294901760
    %490 = vmatpush1.msra.mxu0 %v489
    %491 = vmatprep.subr.mxu0 0.0
    %v492 = vand.u32 %v49, 4294901760
    %v493 = vsub.f32 %v49, %v492
    %v494 = vand.u32 %v493, 4294901760
    %495 = vmatpush1.msra.mxu0 %v494
    %496 = vmatprep.subr.mxu0 0.0
    %v497 = vand.u32 %v48, 4294901760
    %v498 = vsub.f32 %v48, %v497
    %v499 = vand.u32 %v498, 4294901760
    %500 = vmatpush1.msra.mxu0 %v499
    %501 = vmatprep.subr.mxu0 0.0
    %v502 = vand.u32 %v47, 4294901760
    %v503 = vsub.f32 %v47, %v502
    %v504 = vand.u32 %v503, 4294901760
    %505 = vmatpush1.msra.mxu0 %v504
    %506 = vmatprep.subr.mxu0 0.0
    %v507 = vand.u32 %v46, 4294901760
    %v508 = vsub.f32 %v46, %v507
    %v509 = vand.u32 %v508, 4294901760
    %510 = vmatpush1.msra.mxu0 %v509
    %511 = vmatprep.subr.mxu0 0.0
    %v512 = vand.u32 %v45, 4294901760
    %v513 = vsub.f32 %v45, %v512
    %v514 = vand.u32 %v513, 4294901760
    %515 = vmatpush1.msra.mxu0 %v514
    %516 = vmatprep.subr.mxu0 0.0
    %v517 = vand.u32 %v44, 4294901760
    %v518 = vsub.f32 %v44, %v517
    %v519 = vand.u32 %v518, 4294901760
    %520 = vmatpush1.msra.mxu0 %v519
    %521 = vmatprep.subr.mxu0 0.0
    %v522 = vand.u32 %v43, 4294901760
    %v523 = vsub.f32 %v43, %v522
    %v524 = vand.u32 %v523, 4294901760
    %525 = vmatpush1.msra.mxu0 %v524
    %526 = vmatprep.subr.mxu0 0.0
    %v527 = vand.u32 %v42, 4294901760
    %v528 = vsub.f32 %v42, %v527
    %v529 = vand.u32 %v528, 4294901760
    %530 = vmatpush1.msra.mxu0 %v529
    %531 = vmatprep.subr.mxu0 0.0
    %v532 = vand.u32 %v41, 4294901760
    %v533 = vsub.f32 %v41, %v532
    %v534 = vand.u32 %v533, 4294901760
    %535 = vmatpush1.msra.mxu0 %v534
    %536 = vmatprep.subr.mxu0 0.0
    %v537 = vand.u32 %v40, 4294901760
    %v538 = vsub.f32 %v40, %v537
    %v539 = vand.u32 %v538, 4294901760
    %540 = vmatpush1.msra.mxu0 %v539
    %541 = vmatprep.subr.mxu0 0.0
    %v542 = vand.u32 %v39, 4294901760
    %v543 = vsub.f32 %v39, %v542
    %v544 = vand.u32 %v543, 4294901760
    %545 = vmatpush1.msra.mxu0 %v544
    %546 = vmatprep.subr.mxu0 0.0
    %v547 = vand.u32 %v38, 4294901760
    %v548 = vsub.f32 %v38, %v547
    %v549 = vand.u32 %v548, 4294901760
    %550 = vmatpush1.msra.mxu0 %v549
    %551 = vmatprep.subr.mxu0 0.0
    %v552 = vand.u32 %v37, 4294901760
    %v553 = vsub.f32 %v37, %v552
    %v554 = vand.u32 %v553, 4294901760
    %555 = vmatpush1.msra.mxu0 %v554
    %556 = vmatprep.subr.mxu0 0.0
    %v557 = vand.u32 %v36, 4294901760
    %v558 = vsub.f32 %v36, %v557
    %v559 = vand.u32 %v558, 4294901760
    %560 = vmatpush1.msra.mxu0 %v559
    %561 = vmatprep.subr.mxu0 0.0
    %v562 = vand.u32 %v35, 4294901760
    %v563 = vsub.f32 %v35, %v562
    %v564 = vand.u32 %v563, 4294901760
    %565 = vmatpush1.msra.mxu0 %v564
    %566 = vmatprep.subr.mxu0 0.0
    %567 = vmatpush2.msra.mxu0 0.0
    %568 = vmatprep.subr.mxu0 0.0
    %569 = vmatpush2.msra.mxu0 0.0
    %570 = vmatprep.subr.mxu0 0.0
    %571 = vmatpush2.msra.mxu0 0.0
    %572 = vmatprep.subr.mxu0 0.0
    %573 = vmatpush2.msra.mxu0 0.0
    %574 = vmatprep.subr.mxu0 0.0
    %575 = vmatpush2.msra.mxu0 0.0
    %576 = vmatprep.subr.mxu0 0.0
    %577 = vmatpush2.msra.mxu0 0.0
    %578 = vmatprep.subr.mxu0 0.0
    %579 = vmatpush2.msra.mxu0 0.0
    %580 = vmatprep.subr.mxu0 0.0
    %581 = vmatpush2.msra.mxu0 0.0
    %582 = vmatprep.subr.mxu0 0.0
    %583 = vmatpush2.msra.mxu0 0.0
    %584 = vmatprep.subr.mxu0 0.0
    %585 = vmatpush2.msra.mxu0 0.0
    %586 = vmatprep.subr.mxu0 0.0
    %587 = vmatpush2.msra.mxu0 0.0
    %588 = vmatprep.subr.mxu0 0.0
    %589 = vmatpush2.msra.mxu0 0.0
    %590 = vmatprep.subr.mxu0 0.0
    %591 = vmatpush2.msra.mxu0 0.0
    %592 = vmatprep.subr.mxu0 0.0
    %593 = vmatpush2.msra.mxu0 0.0
    %594 = vmatprep.subr.mxu0 0.0
    %595 = vmatpush2.msra.mxu0 0.0
    %596 = vmatprep.subr.mxu0 0.0
    %597 = vmatpush2.msra.mxu0 0.0
    %598 = vmatprep.mubr.f32.mxu0 0.0
    %v599 = vand.u32 %v34, 4294901760
    %600 = vmatmul.mubr.f32.gmra.mxu0 %v599
    %v601 = vpop.f32.mrf.mxu0
    %v602 = vadd.f32 %v483, %v601
    %v603 = vpop.f32.mrf.mxu0
    %604 = vdwg.mxu0
    %605 = vmatprep.subr.mxu0 0.0
    %v606 = vand.u32 %v50, 4294901760
    %607 = vmatpush1.msra.mxu0 %v606
    %608 = vmatprep.subr.mxu0 0.0
    %v609 = vand.u32 %v49, 4294901760
    %610 = vmatpush1.msra.mxu0 %v609
    %611 = vmatprep.subr.mxu0 0.0
    %v612 = vand.u32 %v48, 4294901760
    %613 = vmatpush1.msra.mxu0 %v612
    %614 = vmatprep.subr.mxu0 0.0
    %v615 = vand.u32 %v47, 4294901760
    %616 = vmatpush1.msra.mxu0 %v615
    %617 = vmatprep.subr.mxu0 0.0
    %v618 = vand.u32 %v46, 4294901760
    %619 = vmatpush1.msra.mxu0 %v618
    %620 = vmatprep.subr.mxu0 0.0
    %v621 = vand.u32 %v45, 4294901760
    %622 = vmatpush1.msra.mxu0 %v621
    %623 = vmatprep.subr.mxu0 0.0
    %v624 = vand.u32 %v44, 4294901760
    %625 = vmatpush1.msra.mxu0 %v624
    %626 = vmatprep.subr.mxu0 0.0
    %v627 = vand.u32 %v43, 4294901760
    %628 = vmatpush1.msra.mxu0 %v627
    %629 = vmatprep.subr.mxu0 0.0
    %v630 = vand.u32 %v42, 4294901760
    %631 = vmatpush1.msra.mxu0 %v630
    %632 = vmatprep.subr.mxu0 0.0
    %v633 = vand.u32 %v41, 4294901760
    %634 = vmatpush1.msra.mxu0 %v633
    %635 = vmatprep.subr.mxu0 0.0
    %v636 = vand.u32 %v40, 4294901760
    %637 = vmatpush1.msra.mxu0 %v636
    %638 = vmatprep.subr.mxu0 0.0
    %v639 = vand.u32 %v39, 4294901760
    %640 = vmatpush1.msra.mxu0 %v639
    %641 = vmatprep.subr.mxu0 0.0
    %v642 = vand.u32 %v38, 4294901760
    %643 = vmatpush1.msra.mxu0 %v642
    %644 = vmatprep.subr.mxu0 0.0
    %v645 = vand.u32 %v37, 4294901760
    %646 = vmatpush1.msra.mxu0 %v645
    %647 = vmatprep.subr.mxu0 0.0
    %v648 = vand.u32 %v36, 4294901760
    %649 = vmatpush1.msra.mxu0 %v648
    %650 = vmatprep.subr.mxu0 0.0
    %v651 = vand.u32 %v35, 4294901760
    %652 = vmatpush1.msra.mxu0 %v651
    %653 = vmatprep.subr.mxu0 0.0
    %654 = vmatpush2.msra.mxu0 0.0
    %655 = vmatprep.subr.mxu0 0.0
    %656 = vmatpush2.msra.mxu0 0.0
    %657 = vmatprep.subr.mxu0 0.0
    %658 = vmatpush2.msra.mxu0 0.0
    %659 = vmatprep.subr.mxu0 0.0
    %660 = vmatpush2.msra.mxu0 0.0
    %661 = vmatprep.subr.mxu0 0.0
    %662 = vmatpush2.msra.mxu0 0.0
    %663 = vmatprep.subr.mxu0 0.0
    %664 = vmatpush2.msra.mxu0 0.0
    %665 = vmatprep.subr.mxu0 0.0
    %666 = vmatpush2.msra.mxu0 0.0
    %667 = vmatprep.subr.mxu0 0.0
    %668 = vmatpush2.msra.mxu0 0.0
    %669 = vmatprep.subr.mxu0 0.0
    %670 = vmatpush2.msra.mxu0 0.0
    %671 = vmatprep.subr.mxu0 0.0
    %672 = vmatpush2.msra.mxu0 0.0
    %673 = vmatprep.subr.mxu0 0.0
    %674 = vmatpush2.msra.mxu0 0.0
    %675 = vmatprep.subr.mxu0 0.0
    %676 = vmatpush2.msra.mxu0 0.0
    %677 = vmatprep.subr.mxu0 0.0
    %678 = vmatpush2.msra.mxu0 0.0
    %679 = vmatprep.subr.mxu0 0.0
    %680 = vmatpush2.msra.mxu0 0.0
    %681 = vmatprep.subr.mxu0 0.0
    %682 = vmatpush2.msra.mxu0 0.0
    %683 = vmatprep.subr.mxu0 0.0
    %684 = vmatpush2.msra.mxu0 0.0
    %685 = vmatprep.mubr.f32.mxu0 0.0
    %v686 = vand.u32 %v34, 4294901760
    %687 = vmatmul.mubr.f32.gmra.mxu0 %v686
    %v688 = vpop.f32.mrf.mxu0
    %v689 = vadd.f32 %v602, %v688
    %v690 = vpop.f32.mrf.mxu0
    %691 = vdwg.mxu0
    %692 = vst [vmem:[#allocation5] sm:$0xff] %v689
    // Predicated region
    $region14: #{tpu_custom_call.1} parent=1 // pred_check
      _
    $region15: #{tpu_custom_call.1} parent=1 // pred_check_branch
      %694 = sbr.rel (0) target = $region17
    $region16: #{tpu_custom_call.1} parent=1 // pred_region
      %s696 = ssub.s32 128, 128
      %697 = vsyncadd [#allocation4], %s696
      %s699 = sshll.u32 [#allocation5], 4
      %s700 = int_to_ptr.vmem [resolvable:$true] %s699
      %702 = dma.vmem_to_hbm [thread:$0]  %s700, 128, %s2, [#allocation4]
    $region17: #{tpu_custom_call.1} parent=1 // pred_fallthru
      _
    // Predicated region
    $region18: #{tpu_custom_call.1} parent=1 // pred_check
      _
    $region19: #{tpu_custom_call.1} parent=1 // pred_check_branch
      %704 = sbr.rel (0) target = $region21
    $region20: #{tpu_custom_call.1} parent=1 // pred_region
      %705 = dma.done [#allocation4], 128
    $region21: #{tpu_custom_call.1} parent=1 // pred_fallthru
      _
    %706 = vsyncpa [#allocation3], 1
    %707 = vsyncpa [#allocation4], 1

</llo_original>
